<compile_context>
chip_gen: v7x
topology: tpu7x:2x2x1
jax: 0.10.0
libtpu: 0.0.40
codegen_flags: <defaults>
</compile_context>

<pallas_src>
import functools
import jax
import jax.numpy as jnp
from jax.experimental import pallas as pl
from jax.experimental.pallas import tpu as pltpu

# ---------------- configuration (small, consistent with the module) ----------
HIDDEN = 32          # config['hidden_size']
VOCAB = 30           # config['vocab_size']  (embedding has VOCAB+1 rows)
CLASS_NUM = 4        # config['class_num']
KSIZE = 3            # config['kernel_size'] (must be odd, matches pad=(K-1)//2 semantics)
PAD = (KSIZE - 1) // 2
BATCH = 2
SEQ = 8
POOLING = "max"      # config['pooling_style']
LANES = 128          # lane-dense tile width
VPAD = 32            # per-tap vocab block (VOCAB+1=31 padded to 32)
OOB_IDX = LANES      # sentinel: never matches iota 0..127 -> zero one-hot row (= conv zero pad)

assert KSIZE % 2 == 1, "tap-index construction assumes odd kernel size (PyTorch pad=(K-1)//2)"
assert VOCAB + 1 <= VPAD and KSIZE * VPAD <= LANES and 2 * HIDDEN <= LANES


def _gated_cnn_classify_kernel(idx_ref, weff_ref, wc_ref, bc_ref, out_ref, *,
                               batch, seq_len, hidden, ksize, pooling):
    # idx_ref  : VMEM (B*S, K) int32  per-(row, tap) column index into W_eff (OOB_IDX = zero pad)
    # weff_ref : VMEM (128, 128) bf16 embedding-folded packed conv weights [main | gate]
    # wc_ref   : VMEM (H, 128)  f32   classifier weight (zero-padded lanes)
    # bc_ref   : VMEM (1, 128)  f32   classifier bias (zero-padded lanes)
    # out_ref  : VMEM (B, 128)  f32   logits (lane-dense)
    m = batch * seq_len

    # One-hot-with-taps operand, built fully vectorized in vregs (no scratch, no scalar loop).
    idx = idx_ref[...]                                                 # (M, K) int32
    iota = jax.lax.broadcasted_iota(jnp.int32, (m, LANES), 1)
    hit = iota == idx[:, 0:1]
    for k in range(1, ksize):
        hit = hit | (iota == idx[:, k:k + 1])
    acts = jnp.where(hit, 1.0, 0.0).astype(jnp.bfloat16)               # (M, 128) exact 0/1

    # ONE MXU matmul fuses embedding gather + im2col + main & gate convs.
    res = jnp.dot(acts, weff_ref[...], preferred_element_type=jnp.float32)   # (M, 128) f32
    a = res[:, :hidden]
    g = res[:, hidden:2 * hidden]
    gated = a * jax.nn.sigmoid(g)                                      # (M, H) f32, stays in vregs

    # Pooling over the sequence: static aligned sublane slices + cross-sublane reduce, in-register.
    parts = []
    for b in range(batch):
        blk = gated[b * seq_len:(b + 1) * seq_len, :]                  # (S, H)
        if pooling == "max":
            parts.append(jnp.max(blk, axis=0, keepdims=True))
        else:
            parts.append(jnp.mean(blk, axis=0, keepdims=True))
    pooled = jnp.concatenate(parts, axis=0)                            # (B, H)

    # Classifier (tiny; f32 operands for accuracy) -> lane-dense (B, 128) store.
    logits = jnp.dot(pooled, wc_ref[...], preferred_element_type=jnp.float32) + bc_ref[...]
    out_ref[...] = logits.astype(out_ref.dtype)


def _build_tap_idx(x_ids):
    """(B, S) token ids -> (B*S, K) int32 column indices into W_eff (OOB_IDX for conv padding)."""
    B, S = x_ids.shape
    ids = jnp.clip(x_ids.astype(jnp.int32), 0, VOCAB)   # robustness: bad ids can't alias rows
    pos = jnp.arange(S)
    cols = []
    for k in range(KSIZE):
        t = pos + (k - PAD)                              # input token position feeding output s
        valid = (t >= 0) & (t < S)
        tok = ids[:, jnp.clip(t, 0, S - 1)]              # (B, S)
        idx = jnp.where(valid[None, :], k * VPAD + tok, OOB_IDX)
        cols.append(idx.reshape(B * S, 1))
    return jnp.concatenate(cols, axis=1).astype(jnp.int32)


def torch_model_forward(x_ids, packed):
    """x_ids: int32 (B, S) token ids.  Returns (B, class_num) f32 logits."""
    w_eff, wc_pad, bc_pad = packed
    B, S = x_ids.shape
    tap_idx = _build_tap_idx(x_ids)
    kernel = functools.partial(_gated_cnn_classify_kernel,
                               batch=B, seq_len=S, hidden=HIDDEN,
                               ksize=KSIZE, pooling=POOLING)
    vmem = pl.BlockSpec(memory_space=pltpu.MemorySpace.VMEM)
    out = pl.pallas_call(
        kernel,
        out_shape=jax.ShapeDtypeStruct((B, LANES), jnp.float32),
        in_specs=[vmem, vmem, vmem, vmem],
        out_specs=vmem,
    )(tap_idx, w_eff, wc_pad, bc_pad)
    return out[:, :CLASS_NUM]


def make_params(key):
    """Raw parameters in PyTorch layouts."""
    k_emb, k_wa, k_wb, k_wc, k_bc = jax.random.split(key, 5)
    emb = jax.random.normal(k_emb, (VOCAB + 1, HIDDEN), jnp.float32) * 0.1
    emb = emb.at[0].set(0.0)                                   # padding_idx = 0
    conv_a = jax.random.normal(k_wa, (HIDDEN, HIDDEN, KSIZE), jnp.float32) * 0.1   # (out, in, K)
    conv_b = jax.random.normal(k_wb, (HIDDEN, HIDDEN, KSIZE), jnp.float32) * 0.1
    wc = jax.random.normal(k_wc, (CLASS_NUM, HIDDEN), jnp.float32) * 0.1           # torch (C, H)
    bc = jax.random.normal(k_bc, (CLASS_NUM,), jnp.float32) * 0.1
    return emb, conv_a, conv_b, wc, bc


def pack_params(raw):
    """Fold the embedding table into the packed conv weights; pad everything to 128 lanes."""
    emb, conv_a, conv_b, wc, bc = raw
    w_eff = jnp.zeros((LANES, LANES), jnp.float32)
    for k in range(KSIZE):
        w_tap = jnp.concatenate([conv_a[:, :, k].T, conv_b[:, :, k].T], axis=1)  # (H, 2H)
        block = emb @ w_tap                                                       # (V+1, 2H)
        w_eff = w_eff.at[k * VPAD:k * VPAD + VOCAB + 1, :2 * HIDDEN].set(block)
    w_eff = w_eff.astype(jnp.bfloat16)
    wc_pad = jnp.zeros((HIDDEN, LANES), jnp.float32).at[:, :CLASS_NUM].set(wc.T)
    bc_pad = jnp.zeros((1, LANES), jnp.float32).at[:, :CLASS_NUM].set(bc[None, :])
    return w_eff, wc_pad, bc_pad


def reference_forward(x_ids, raw):
    """Pure-JAX, f32, PyTorch-faithful reference (embedding -> gated conv -> max pool -> linear)."""
    emb, conv_a, conv_b, wc, bc = raw
    x = emb[jnp.clip(x_ids, 0, VOCAB)]                        # (B, S, H)
    B, S, _ = x.shape
    xp = jnp.pad(x, ((0, 0), (PAD, PAD), (0, 0)))             # Conv1d zero padding

    def conv(w):
        return sum(jnp.einsum('bsh,oh->bso', xp[:, k:k + S, :], w[:, :, k])
                   for k in range(KSIZE))

    a = conv(conv_a)
    g = conv(conv_b)
    gated = a * jax.nn.sigmoid(g)
    pooled = gated.max(axis=1) if POOLING == "max" else gated.mean(axis=1)
    return pooled @ wc.T + bc[None, :]


if __name__ == "__main__":
    key = jax.random.PRNGKey(0)
    k_par, k_ids = jax.random.split(key)
    raw = make_params(k_par)
    packed = pack_params(raw)
    x_ids = jax.random.randint(k_ids, (BATCH, SEQ), 0, VOCAB + 1, dtype=jnp.int32)

    out = jax.block_until_ready(torch_model_forward(x_ids, packed))
    ref = jax.block_until_ready(reference_forward(x_ids, raw))

    assert out.shape == (BATCH, CLASS_NUM)
    assert jnp.allclose(out, ref, atol=2e-3, rtol=1e-2), (out, ref)
    print("KERNEL_OK")
</pallas_src>

<mosaic_0001>
module attributes {stable_mosaic.version = 11 : i64} {
  func.func @_gated_cnn_classify_kernel(%arg0: memref<16x3xi32, #tpu.memory_space<vmem>>, %arg1: memref<128x128xbf16, #tpu.memory_space<vmem>>, %arg2: memref<32x128xf32, #tpu.memory_space<vmem>>, %arg3: memref<1x128xf32, #tpu.memory_space<vmem>>, %arg4: memref<2x128xf32, #tpu.memory_space<vmem>>) attributes {dimension_semantics = [], scalar_prefetch = 0 : i64, scratch_operands = 0 : i64, tpu.core_type = #tpu.core_type<tc>} {
    %c0 = arith.constant 0 : index
    %c0_0 = arith.constant 0 : index
    %0 = vector.load %arg0[%c0, %c0_0] : memref<16x3xi32, #tpu.memory_space<vmem>>, vector<16x3xi32>
    %1 = tpu.iota {dimensions = array<i32: 1>} : vector<16x128xi32>
    %2 = vector.extract_strided_slice %0 {offsets = [0, 0], sizes = [16, 1], strides = [1, 1]} : vector<16x3xi32> to vector<16x1xi32>
    %3 = vector.broadcast %2 : vector<16x1xi32> to vector<16x128xi32>
    %4 = arith.cmpi eq, %1, %3 : vector<16x128xi32>
    %5 = vector.extract_strided_slice %0 {offsets = [0, 1], sizes = [16, 1], strides = [1, 1]} : vector<16x3xi32> to vector<16x1xi32>
    %6 = vector.broadcast %5 : vector<16x1xi32> to vector<16x128xi32>
    %7 = arith.cmpi eq, %1, %6 : vector<16x128xi32>
    %8 = arith.ori %4, %7 : vector<16x128xi1>
    %9 = vector.extract_strided_slice %0 {offsets = [0, 2], sizes = [16, 1], strides = [1, 1]} : vector<16x3xi32> to vector<16x1xi32>
    %10 = vector.broadcast %9 : vector<16x1xi32> to vector<16x128xi32>
    %11 = arith.cmpi eq, %1, %10 : vector<16x128xi32>
    %12 = arith.ori %8, %11 : vector<16x128xi1>
    %cst = arith.constant 1.000000e+00 : f32
    %cst_1 = arith.constant 0.000000e+00 : f32
    %13 = vector.broadcast %cst : f32 to vector<16x128xf32>
    %14 = vector.broadcast %cst_1 : f32 to vector<16x128xf32>
    %15 = arith.select %12, %13, %14 : vector<16x128xi1>, vector<16x128xf32>
    %16 = arith.truncf %15 : vector<16x128xf32> to vector<16x128xbf16>
    %c0_2 = arith.constant 0 : index
    %c0_3 = arith.constant 0 : index
    %17 = vector.load %arg1[%c0_2, %c0_3] : memref<128x128xbf16, #tpu.memory_space<vmem>>, vector<128x128xbf16>
    %cst_4 = arith.constant dense<0.000000e+00> : vector<16x128xf32>
    %18 = tpu.matmul %16, %17, %cst_4 {dimension_numbers = #tpu.dot_dimension_numbers<[1], [0], [0], [1], [0, 0, 1, 1], [], []>} : vector<16x128xbf16>, vector<128x128xbf16>, vector<16x128xf32> -> vector<16x128xf32>
    %19 = vector.extract_strided_slice %18 {offsets = [0, 0], sizes = [16, 32], strides = [1, 1]} : vector<16x128xf32> to vector<16x32xf32>
    %20 = vector.extract_strided_slice %18 {offsets = [0, 32], sizes = [16, 32], strides = [1, 1]} : vector<16x128xf32> to vector<16x32xf32>
    %21 = arith.negf %20 : vector<16x32xf32>
    %22 = math.exp %21 : vector<16x32xf32>
    %cst_5 = arith.constant 1.000000e+00 : f32
    %23 = vector.broadcast %cst_5 : f32 to vector<16x32xf32>
    %24 = arith.addf %23, %22 : vector<16x32xf32>
    %25 = arith.divf %23, %24 : vector<16x32xf32>
    %26 = arith.mulf %19, %25 : vector<16x32xf32>
    %27 = vector.extract_strided_slice %26 {offsets = [0, 0], sizes = [8, 32], strides = [1, 1]} : vector<16x32xf32> to vector<8x32xf32>
    %cst_6 = arith.constant dense<0xFF800000> : vector<32xf32>
    %28 = vector.multi_reduction <maximumf>, %27, %cst_6 [0] : vector<8x32xf32> to vector<32xf32>
    %29 = vector.shape_cast %28 : vector<32xf32> to vector<1x32xf32>
    %30 = vector.extract_strided_slice %26 {offsets = [8, 0], sizes = [8, 32], strides = [1, 1]} : vector<16x32xf32> to vector<8x32xf32>
    %cst_7 = arith.constant dense<0xFF800000> : vector<32xf32>
    %31 = vector.multi_reduction <maximumf>, %30, %cst_7 [0] : vector<8x32xf32> to vector<32xf32>
    %32 = vector.shape_cast %31 : vector<32xf32> to vector<1x32xf32>
    %33 = tpu.concatenate %29, %32 in 0 : vector<1x32xf32>, vector<1x32xf32> -> vector<2x32xf32>
    %c0_8 = arith.constant 0 : index
    %c0_9 = arith.constant 0 : index
    %34 = vector.load %arg2[%c0_8, %c0_9] : memref<32x128xf32, #tpu.memory_space<vmem>>, vector<32x128xf32>
    %cst_10 = arith.constant dense<0.000000e+00> : vector<2x128xf32>
    %35 = tpu.matmul %33, %34, %cst_10 {dimension_numbers = #tpu.dot_dimension_numbers<[1], [0], [0], [1], [0, 0, 1, 1], [], []>} : vector<2x32xf32>, vector<32x128xf32>, vector<2x128xf32> -> vector<2x128xf32>
    %c0_11 = arith.constant 0 : index
    %c0_12 = arith.constant 0 : index
    %36 = vector.load %arg3[%c0_11, %c0_12] : memref<1x128xf32, #tpu.memory_space<vmem>>, vector<1x128xf32>
    %37 = vector.broadcast %36 : vector<1x128xf32> to vector<2x128xf32>
    %38 = arith.addf %35, %37 : vector<2x128xf32>
    %c0_13 = arith.constant 0 : index
    %c0_14 = arith.constant 0 : index
    %39 = vector.load %arg4[%c0_13, %c0_14] : memref<2x128xf32, #tpu.memory_space<vmem>>, vector<2x128xf32>
    tpu.vector_store %arg4[%c0_13, %c0_14], %38 {strides = array<i32>} : memref<2x128xf32, #tpu.memory_space<vmem>>, vector<2x128xf32>,
    return
  }
}

</mosaic_0001>

<llo_original>
// kernel: tpu_custom_call.1
$region0: #{tpu_custom_call.1}
  #allocation0 [shape = 'u32[]', space=smem, size = 0x4, offset = 0x4, fixed_abs, tag = 'smem constant byte address 0x4 - core index']
  #allocation1 [shape = 'u32[144,128]{1,0:T(1,128)}', space=vmem, size = 0x12000, scoped, tag = 'internal scratch']
  %s0 = inlined_call_operand.vmem [shape: s32[16,3], index: 0, kind: input, shape index: {}]
  %s1 = inlined_call_operand.hbm [shape: bf16[128,128], index: 1, kind: input, shape index: {}]
  %s2 = inlined_call_operand.hbm [shape: f32[32,128], index: 2, kind: input, shape index: {}]
  %s3 = inlined_call_operand.vmem [shape: f32[1,128], index: 3, kind: input, shape index: {}]
  %s4 = inlined_call_operand.hbm [shape: f32[2,128], index: 4, kind: output, shape index: {}]
  %s5 = sld [smem:[#allocation0]]
  $region34: #{tpu_custom_call.1} parent=0
    _
  %s7 = ssub.s32 1, %s5
  %s8 = scalar_select 0, %s7, %s5
  $region1: #{tpu_custom_call.1} parent=0
    #allocation2 [shape = 'u8[32768]{0}', space=vmem, size = 0x8000, scoped, tag = 'input window, operand 1, single buffered']
    #allocation3 [shape = 's32[1]{0}', space=sflag, size = 0x4, scoped, tag = 'scoped memory for tpu_custom_call.1']
    #allocation4 [shape = 's32[1]{0}', space=sflag, size = 0x4, scoped, tag = 'scoped memory for tpu_custom_call.1']
    #allocation5 [shape = 'u8[16384]{0}', space=vmem, size = 0x4000, scoped, tag = 'input window, operand 2, single buffered']
    #allocation6 [shape = 's32[1]{0}', space=sflag, size = 0x4, scoped, tag = 'scoped memory for tpu_custom_call.1']
    #allocation7 [shape = 'u8[1024]{0}', space=vmem, size = 0x400, scoped, tag = 'output window, operand 0, single buffered']
    %9 = vsyncpa [#allocation3], 0
    %10 = vsyncpa [#allocation6], 0
    %11 = vsyncpa [#allocation4], 0
    // Predicated region
    $region2: #{tpu_custom_call.1} parent=1 // pred_check
      _
    $region3: #{tpu_custom_call.1} parent=1 // pred_check_branch
      %13 = sbr.rel (0) target = $region5
    $region4: #{tpu_custom_call.1} parent=1 // pred_region
      _
    $region5: #{tpu_custom_call.1} parent=1 // pred_fallthru
      _
    // Predicated region
    $region6: #{tpu_custom_call.1} parent=1 // pred_check
      _
    $region7: #{tpu_custom_call.1} parent=1 // pred_check_branch
      %15 = sbr.rel (0) target = $region9
    $region8: #{tpu_custom_call.1} parent=1 // pred_region
      %s17 = ssub.s32 1024, 1024
      %18 = vsyncadd [#allocation3], %s17
      %s19 = sshll.u32 [#allocation2], 4
      %s20 = int_to_ptr.vmem [resolvable:$true] %s19
      %25 = dma.hbm_to_vmem [thread:$0]  %s1, 1024, %s20, [#allocation3], 64, 64, 4
    $region9: #{tpu_custom_call.1} parent=1 // pred_fallthru
      _
    // Predicated region
    $region10: #{tpu_custom_call.1} parent=1 // pred_check
      _
    $region11: #{tpu_custom_call.1} parent=1 // pred_check_branch
      %27 = sbr.rel (0) target = $region13
    $region12: #{tpu_custom_call.1} parent=1 // pred_region
      %s29 = ssub.s32 512, 512
      %30 = vsyncadd [#allocation6], %s29
      %s31 = sshll.u32 [#allocation5], 4
      %s32 = int_to_ptr.vmem [resolvable:$true] %s31
      %37 = dma.hbm_to_vmem [thread:$0]  %s2, 512, %s32, [#allocation6], 128, 128, 8
    $region13: #{tpu_custom_call.1} parent=1 // pred_fallthru
      _
    // Predicated region
    $region14: #{tpu_custom_call.1} parent=1 // pred_check
      _
    $region15: #{tpu_custom_call.1} parent=1 // pred_check_branch
      %39 = sbr.rel (0) target = $region17
    $region16: #{tpu_custom_call.1} parent=1 // pred_region
      _
    $region17: #{tpu_custom_call.1} parent=1 // pred_fallthru
      _
    // Predicated region
    $region18: #{tpu_custom_call.1} parent=1 // pred_check
      _
    $region19: #{tpu_custom_call.1} parent=1 // pred_check_branch
      %41 = sbr.rel (0) target = $region21
    $region20: #{tpu_custom_call.1} parent=1 // pred_region
      %42 = dma.done [#allocation3], 1024
    $region21: #{tpu_custom_call.1} parent=1 // pred_fallthru
      _
    // Predicated region
    $region22: #{tpu_custom_call.1} parent=1 // pred_check
      _
    $region23: #{tpu_custom_call.1} parent=1 // pred_check_branch
      %44 = sbr.rel (0) target = $region25
    $region24: #{tpu_custom_call.1} parent=1 // pred_region
      %45 = dma.done [#allocation6], 512
    $region25: #{tpu_custom_call.1} parent=1 // pred_fallthru
      _
    %v47 = vld [vmem:[%s0] sm:$0xff]
    %v48 = vld [vmem:[%s0 + $0x8] sm:$0xff]
    %v49 = vlaneseq
    %v50 = vand.u32 %v49, 127
    %51 = vset.pattern.permute.xlu0 0
    %52 = vperm.xlu0 %51, %v47
    %v53 = vpop.permute.xlu0 %52
    %54 = vset.pattern.permute.xlu0 0
    %55 = vperm.xlu0 %54, %v48
    %v56 = vpop.permute.xlu0 %55
    %vm57 = vcmp.eq.s32.totalorder %v50, %v53
    %vm58 = vcmp.eq.s32.totalorder %v50, %v56
    %59 = vset.pattern.permute.xlu0 1
    %60 = vperm.xlu0 %59, %v47
    %v61 = vpop.permute.xlu0 %60
    %62 = vset.pattern.permute.xlu0 1
    %63 = vperm.xlu0 %62, %v48
    %v64 = vpop.permute.xlu0 %63
    %vm65 = vcmp.eq.s32.totalorder %v50, %v61
    %vm66 = vcmp.eq.s32.totalorder %v50, %v64
    %vm67 = vmor %vm57, %vm65
    %vm68 = vmor %vm58, %vm66
    %69 = vset.pattern.permute.xlu0 2
    %70 = vperm.xlu0 %69, %v47
    %v71 = vpop.permute.xlu0 %70
    %72 = vset.pattern.permute.xlu0 2
    %73 = vperm.xlu0 %72, %v48
    %v74 = vpop.permute.xlu0 %73
    %vm75 = vcmp.eq.s32.totalorder %v50, %v71
    %vm76 = vcmp.eq.s32.totalorder %v50, %v74
    %vm77 = vmor %vm67, %vm75
    %vm78 = vmor %vm68, %vm76
    %v79 = vsel %vm77, 1.0, 0.0
    %v80 = vsel %vm78, 1.0, 0.0
    %v81 = vpack.c.bf16 %v80, %v79
    %v82 = vld [vmem:[#allocation2] sm:$0xf]
    %v83 = vld [vmem:[#allocation2 + $0x4] sm:$0xf]
    %v84 = vld [vmem:[#allocation2 + $0x8] sm:$0xf]
    %v85 = vld [vmem:[#allocation2 + $0xc] sm:$0xf]
    %v86 = vld [vmem:[#allocation2 + $0x10] sm:$0xf]
    %v87 = vld [vmem:[#allocation2 + $0x14] sm:$0xf]
    %v88 = vld [vmem:[#allocation2 + $0x18] sm:$0xf]
    %v89 = vld [vmem:[#allocation2 + $0x1c] sm:$0xf]
    %v90 = vld [vmem:[#allocation2 + $0x20] sm:$0xf]
    %v91 = vld [vmem:[#allocation2 + $0x24] sm:$0xf]
    %v92 = vld [vmem:[#allocation2 + $0x28] sm:$0xf]
    %v93 = vld [vmem:[#allocation2 + $0x2c] sm:$0xf]
    %v94 = vld [vmem:[#allocation2 + $0x30] sm:$0xf]
    %v95 = vld [vmem:[#allocation2 + $0x34] sm:$0xf]
    %v96 = vld [vmem:[#allocation2 + $0x38] sm:$0xf]
    %v97 = vld [vmem:[#allocation2 + $0x3c] sm:$0xf]
    %v114 = vunpack.c.l.b16 %v82
    %v115 = vunpack.c.l.b16 %v83
    %v116 = vunpack.c.l.b16 %v84
    %v117 = vunpack.c.l.b16 %v85
    %v118 = vunpack.c.l.b16 %v86
    %v119 = vunpack.c.l.b16 %v87
    %v120 = vunpack.c.l.b16 %v88
    %v121 = vunpack.c.l.b16 %v89
    %v122 = vunpack.c.l.b16 %v90
    %v123 = vunpack.c.l.b16 %v91
    %v124 = vunpack.c.l.b16 %v92
    %v125 = vunpack.c.l.b16 %v93
    %v126 = vunpack.c.l.b16 %v94
    %v127 = vunpack.c.l.b16 %v95
    %v128 = vunpack.c.l.b16 %v96
    %v129 = vunpack.c.l.b16 %v97
    %v130 = vpack.c.b16 %v115, %v114
    %v131 = vpack.c.b16 %v117, %v116
    %v132 = vpack.c.b16 %v119, %v118
    %v133 = vpack.c.b16 %v121, %v120
    %v134 = vpack.c.b16 %v123, %v122
    %v135 = vpack.c.b16 %v125, %v124
    %v136 = vpack.c.b16 %v127, %v126
    %v137 = vpack.c.b16 %v129, %v128
    %146 = vmatprep.subr.bf16.mxu0 0
    %147 = vmatpush1.bf16.msra.mxu0 %v130
    %148 = vmatprep.subr.bf16.mxu0 0
    %149 = vmatpush1.bf16.msra.mxu0 %v131
    %150 = vmatprep.subr.bf16.mxu0 0
    %151 = vmatpush1.bf16.msra.mxu0 %v132
    %152 = vmatprep.subr.bf16.mxu0 0
    %153 = vmatpush1.bf16.msra.mxu0 %v133
    %154 = vmatprep.subr.bf16.mxu0 0
    %155 = vmatpush1.bf16.msra.mxu0 %v134
    %156 = vmatprep.subr.bf16.mxu0 0
    %157 = vmatpush1.bf16.msra.mxu0 %v135
    %158 = vmatprep.subr.bf16.mxu0 0
    %159 = vmatpush1.bf16.msra.mxu0 %v136
    %160 = vmatprep.subr.bf16.mxu0 0
    %161 = vmatpush1.bf16.msra.mxu0 %v137
    %162 = vmatprep.subr.bf16.mxu0 0
    %163 = vmatpush1.bf16.msra.mxu0 0
    %164 = vmatprep.subr.bf16.mxu0 0
    %165 = vmatpush1.bf16.msra.mxu0 0
    %166 = vmatprep.subr.bf16.mxu0 0
    %167 = vmatpush1.bf16.msra.mxu0 0
    %168 = vmatprep.subr.bf16.mxu0 0
    %169 = vmatpush1.bf16.msra.mxu0 0
    %170 = vmatprep.subr.bf16.mxu0 0
    %171 = vmatpush1.bf16.msra.mxu0 0
    %172 = vmatprep.subr.bf16.mxu0 0
    %173 = vmatpush1.bf16.msra.mxu0 0
    %174 = vmatprep.subr.bf16.mxu0 0
    %175 = vmatpush1.bf16.msra.mxu0 0
    %176 = vmatprep.subr.bf16.mxu0 0
    %177 = vmatpush1.bf16.msra.mxu0 0
    %178 = vmatprep.mubr.bf16.mxu0 0
    %179 = vmatmul.mubr.bf16.gmra.mrb[0].mxu0 %v81
    %v180 = vpop.f32.mrb[0].mxu0
    %v181 = vadd.f32 0.0, %v180
    %v182 = vpop.f32.mrb[0].mxu0
    %v183 = vpop.f32.mrb[0].mxu0
    %v184 = vadd.f32 0.0, %v183
    %v185 = vpop.f32.mrb[0].mxu0
    %186 = vdwg.mxu0
    %v187 = vxor.u32 %v181, 2147483648
    %v188 = vxor.u32 %v184, 2147483648
    %v189 = vmul.f32 %v187, 1.442695
    %v190 = vpow.pop %v189
    %v191 = vmul.f32 %v188, 1.442695
    %v192 = vpow.pop %v191
    %v193 = vadd.f32 %v190, 1.0
    %v194 = vadd.f32 %v192, 1.0
    %v195 = vrcp.pop %v193
    %v196 = vmul.f32 1.0, %v195
    %v197 = vrcp.pop %v194
    %v198 = vmul.f32 1.0, %v197
    %201 = vrot.lane.b32.xlu0 %v196, 96
    %v202 = vpop.permute.xlu0 %201
    %203 = vrot.lane.b32.xlu0 %v198, 96
    %v204 = vpop.permute.xlu0 %203
    %v207 = vmul.f32 %v181, %v202
    %v208 = vmul.f32 %v184, %v204
    %vm209 = vcmask 261120
    %v210 = vsel %vm209, %v207, -inf
    %v211 = vrot.slane %v210, 4
    %v212 = vmax.f32 %v210, %v211
    %v213 = vrot.slane %v212, 2
    %v214 = vmax.f32 %v212, %v213
    %v215 = vrot.slane %v214, 1
    %v216 = vmax.f32 %v214, %v215
    %v217 = vsel %vm209, %v208, -inf
    %v218 = vrot.slane %v217, 4
    %v219 = vmax.f32 %v217, %v218
    %v220 = vrot.slane %v219, 2
    %v221 = vmax.f32 %v219, %v220
    %v222 = vrot.slane %v221, 1
    %v223 = vmax.f32 %v221, %v222
    %vm224 = vcmask 1040384
    %v225 = vsel %vm224, %v216, %v223
    %v226 = vld [vmem:[#allocation5] sm:$0xff]
    %v227 = vld [vmem:[#allocation5 + $0x8] sm:$0xff]
    %v228 = vld [vmem:[#allocation5 + $0x10] sm:$0xff]
    %v229 = vld [vmem:[#allocation5 + $0x18] sm:$0xff]
    %v230 = vld [vmem:[%s3] sm:$0x1]
    %v232 = vlaneseq
    %v233 = vshrl.u32 %v232, 7
    %v234 = vsub.s32 0, %v233
    %v235 = vrot.slane %v230, %v234
    %v238 = vsel %vm209, %v225, 0
    %240 = vmatprep.subr.mxu0 0.0
    %241 = vmatpush1.msra.mxu0 %v226
    %242 = vmatprep.subr.mxu0 0.0
    %243 = vmatpush1.msra.mxu0 %v227
    %244 = vmatprep.subr.mxu0 0.0
    %245 = vmatpush1.msra.mxu0 %v228
    %246 = vmatprep.subr.mxu0 0.0
    %247 = vmatpush1.msra.mxu0 %v229
    %248 = vmatprep.subr.mxu0 0.0
    %249 = vmatpush1.msra.mxu0 0.0
    %250 = vmatprep.subr.mxu0 0.0
    %251 = vmatpush1.msra.mxu0 0.0
    %252 = vmatprep.subr.mxu0 0.0
    %253 = vmatpush1.msra.mxu0 0.0
    %254 = vmatprep.subr.mxu0 0.0
    %255 = vmatpush1.msra.mxu0 0.0
    %256 = vmatprep.subr.mxu0 0.0
    %257 = vmatpush1.msra.mxu0 0.0
    %258 = vmatprep.subr.mxu0 0.0
    %259 = vmatpush1.msra.mxu0 0.0
    %260 = vmatprep.subr.mxu0 0.0
    %261 = vmatpush1.msra.mxu0 0.0
    %262 = vmatprep.subr.mxu0 0.0
    %263 = vmatpush1.msra.mxu0 0.0
    %264 = vmatprep.subr.mxu0 0.0
    %265 = vmatpush1.msra.mxu0 0.0
    %266 = vmatprep.subr.mxu0 0.0
    %267 = vmatpush1.msra.mxu0 0.0
    %268 = vmatprep.subr.mxu0 0.0
    %269 = vmatpush1.msra.mxu0 0.0
    %270 = vmatprep.subr.mxu0 0.0
    %271 = vmatpush1.msra.mxu0 0.0
    %272 = vmatprep.subr.mxu0 0.0
    %273 = vmatpush1.msra.mxu0 0.0
    %274 = vmatprep.subr.mxu0 0.0
    %275 = vmatpush1.msra.mxu0 0.0
    %276 = vmatprep.subr.mxu0 0.0
    %277 = vmatpush1.msra.mxu0 0.0
    %278 = vmatprep.subr.mxu0 0.0
    %279 = vmatpush1.msra.mxu0 0.0
    %280 = vmatprep.subr.mxu0 0.0
    %281 = vmatpush1.msra.mxu0 0.0
    %282 = vmatprep.subr.mxu0 0.0
    %283 = vmatpush1.msra.mxu0 0.0
    %284 = vmatprep.subr.mxu0 0.0
    %285 = vmatpush1.msra.mxu0 0.0
    %286 = vmatprep.subr.mxu0 0.0
    %287 = vmatpush1.msra.mxu0 0.0
    %288 = vmatprep.subr.mxu0 0.0
    %289 = vmatpush1.msra.mxu0 0.0
    %290 = vmatprep.subr.mxu0 0.0
    %291 = vmatpush1.msra.mxu0 0.0
    %292 = vmatprep.subr.mxu0 0.0
    %293 = vmatpush1.msra.mxu0 0.0
    %294 = vmatprep.subr.mxu0 0.0
    %295 = vmatpush1.msra.mxu0 0.0
    %296 = vmatprep.subr.mxu0 0.0
    %297 = vmatpush1.msra.mxu0 0.0
    %298 = vmatprep.subr.mxu0 0.0
    %299 = vmatpush1.msra.mxu0 0.0
    %300 = vmatprep.subr.mxu0 0.0
    %301 = vmatpush1.msra.mxu0 0.0
    %302 = vmatprep.subr.mxu0 0.0
    %303 = vmatpush1.msra.mxu0 0.0
    %304 = vmatprep.mubr.f32.mxu0 0.0
    %305 = vmatmul.mubr.f32.gmra.mrb[0].mxu0 %v238
    %v306 = vpop.f32.mrb[0].mxu0
    %v307 = vadd.f32 %v235, %v306
    %v308 = vpop.f32.mrb[0].mxu0
    %309 = vdwg.mxu0
    %310 = vst [vmem:[#allocation7] sm:$0x3] %v307
    // Predicated region
    $region26: #{tpu_custom_call.1} parent=1 // pred_check
      _
    $region27: #{tpu_custom_call.1} parent=1 // pred_check_branch
      %312 = sbr.rel (0) target = $region29
    $region28: #{tpu_custom_call.1} parent=1 // pred_region
      %s314 = ssub.s32 32, 32
      %315 = vsyncadd [#allocation4], %s314
      %s317 = sshll.u32 [#allocation7], 4
      %s318 = int_to_ptr.vmem [resolvable:$true] %s317
      %320 = dma.vmem_to_hbm [thread:$0]  %s318, 32, %s4, [#allocation4]
    $region29: #{tpu_custom_call.1} parent=1 // pred_fallthru
      _
    // Predicated region
    $region30: #{tpu_custom_call.1} parent=1 // pred_check
      _
    $region31: #{tpu_custom_call.1} parent=1 // pred_check_branch
      %322 = sbr.rel (0) target = $region33
    $region32: #{tpu_custom_call.1} parent=1 // pred_region
      %323 = dma.done [#allocation4], 32
    $region33: #{tpu_custom_call.1} parent=1 // pred_fallthru
      _
    %324 = vsyncpa [#allocation3], 1
    %325 = vsyncpa [#allocation6], 1
    %326 = vsyncpa [#allocation4], 1

</llo_original>
